<compile_context>
chip_gen: v6e
topology: v6e:2x2x1
jax: 0.10.0
libtpu: 0.0.40
codegen_flags: <defaults>
</compile_context>

<pallas_src>
import jax
import jax.numpy as jnp
from jax import lax
from jax.experimental import pallas as pl
from jax.experimental.pallas import tpu as pltpu

BN_EPS = 1e-5
N_PAD = 128  # output lane padding (true output width is 3)


def _round_up(x, m):
    return ((x + m - 1) // m) * m


def fusion_head_kernel(v_ref, t_ref,
                       wv_ref, bv_ref,
                       wt_ref, bt_ref,
                       wov_ref, wot_ref, bo_ref,
                       out_ref):
    """One batch tile. BN is pre-folded into wv/bv and wt/bt on the host.

    Activations arrive in their source dtype (typically f32) and are cast to
    the weight dtype right before each MXU op (hidden under DMA on the VPU);
    all matmuls accumulate in f32. Dropout(eval) == identity.
    """
    cdt = wv_ref.dtype  # compute dtype carried by the (BN-folded) weights

    v = jnp.maximum(
        jnp.dot(v_ref[...].astype(cdt), wv_ref[...],
                preferred_element_type=jnp.float32) + bv_ref[...], 0.0)
    t = jnp.maximum(
        jnp.dot(t_ref[...].astype(cdt), wt_ref[...],
                preferred_element_type=jnp.float32) + bt_ref[...], 0.0)

    # output(concat([v, t])) == v @ wo[:D] + t @ wo[D:]  (concat never
    # materialized -> no extra VMEM stores on the scarce vst slot).
    out = (jnp.dot(v.astype(cdt), wov_ref[...], preferred_element_type=jnp.float32)
           + jnp.dot(t.astype(cdt), wot_ref[...], preferred_element_type=jnp.float32)
           + bo_ref[...])
    out_ref[...] = out.astype(out_ref.dtype)


def fusion_head(v_emb, t_emb, params, *,
                batch_tile=512,
                compute_dtype=jnp.bfloat16,
                vmem_limit_bytes=None,
                single_buffer_weights=True,
                act_buffer_count=None):
    B, vdim = v_emb.shape
    Bt, tdim = t_emb.shape
    assert B == Bt
    D = params["wv"].shape[1]
    f32 = jnp.float32

    # ---- host/trace-time prep: fold eval-mode BatchNorm into the linears ----
    # y = (x@W + b - mean) * gamma/sqrt(var+eps) + beta
    #   = x @ (W*scale) + ((b - mean)*scale + beta)
    scale = params["bn_gamma"].astype(f32) * lax.rsqrt(params["bn_var"].astype(f32) + BN_EPS)
    wv = (params["wv"].astype(f32) * scale[None, :]).astype(compute_dtype)
    wt = (params["wt"].astype(f32) * scale[None, :]).astype(compute_dtype)
    bv = ((params["bv"].astype(f32) - params["bn_mean"].astype(f32)) * scale
          + params["bn_beta"].astype(f32)).reshape(1, D)
    bt = ((params["bt"].astype(f32) - params["bn_mean"].astype(f32)) * scale
          + params["bn_beta"].astype(f32)).reshape(1, D)

    # Split the output weight into the v / t halves and pad the 3 output lanes
    # to 128 (MXU pads N internally anyway; this keeps the HBM writeback
    # contiguous and the stores unmasked). Biases stay f32.
    wo = params["wo"].astype(f32)                               # [2D, 3]
    wov = jnp.pad(wo[:D], ((0, 0), (0, N_PAD - 3))).astype(compute_dtype)   # [D, 128]
    wot = jnp.pad(wo[D:], ((0, 0), (0, N_PAD - 3))).astype(compute_dtype)   # [D, 128]
    bo = jnp.pad(params["bo"].astype(f32).reshape(1, 3), ((0, 0), (0, N_PAD - 3)))

    # ---- batch tile: big (amortizes ~0.35us/step overhead), no host padding;
    # the ragged last block is handled by Pallas (rows are independent). ----
    tile = max(8, min(batch_tile, _round_up(B, 8)))
    tile = (tile // 8) * 8
    grid = (pl.cdiv(B, tile),)

    def act_spec(width):
        kwargs = {}
        if act_buffer_count is not None:
            # v7x knob: 3-deep activation buffering if DMA is exposed.
            kwargs["pipeline_mode"] = pl.Buffered(act_buffer_count)
        return pl.BlockSpec((tile, width), lambda i: (i, 0), **kwargs)

    if single_buffer_weights:
        # Grid-invariant weights pinned whole in VMEM (single copy, no per-step
        # double buffering) -> VMEM headroom, most valuable on v7x (64 MiB).
        w_spec = lambda shape: pl.BlockSpec(memory_space=pltpu.MemorySpace.VMEM)
    else:
        # Constant index_map: the pipeline fetches these once and reuses them.
        w_spec = lambda shape: pl.BlockSpec(shape, lambda i: (0, 0))

    if vmem_limit_bytes is None:
        # ~2x the actual footprint, floored at the smallest scoped default
        # (16 MiB, v5e) and capped well below v7x's 64 MiB physical VMEM.
        wisz = jnp.dtype(compute_dtype).itemsize
        w_bytes = (vdim * D + tdim * D + 2 * D * N_PAD) * wisz + (2 * D + N_PAD) * 4
        if not single_buffer_weights:
            w_bytes *= 2
        act_bytes = 2 * tile * (vdim + tdim) * jnp.dtype(v_emb.dtype).itemsize
        out_bytes = 2 * tile * N_PAD * 4
        vmem_limit_bytes = int(min(max(2 * (w_bytes + act_bytes + out_bytes),
                                       16 * 1024 * 1024),
                                   48 * 1024 * 1024))

    out = pl.pallas_call(
        fusion_head_kernel,
        out_shape=jax.ShapeDtypeStruct((B, N_PAD), jnp.float32),
        grid_spec=pltpu.PrefetchScalarGridSpec(
            num_scalar_prefetch=0,
            grid=grid,
            in_specs=[
                act_spec(vdim),            # v_emb tile (source dtype, streamed)
                act_spec(tdim),            # t_emb tile
                w_spec((vdim, D)),         # Wv (BN-folded, pre-transposed)
                w_spec((1, D)),            # bv (BN-folded, f32)
                w_spec((tdim, D)),         # Wt (BN-folded, pre-transposed)
                w_spec((1, D)),            # bt (BN-folded, f32)
                w_spec((D, N_PAD)),        # Wo[:D]  (lane-padded)
                w_spec((D, N_PAD)),        # Wo[D:]  (lane-padded)
                w_spec((1, N_PAD)),        # bo (f32, lane-padded)
            ],
            out_specs=pl.BlockSpec((tile, N_PAD), lambda i: (i, 0)),
        ),
        compiler_params=pltpu.CompilerParams(
            dimension_semantics=("parallel",),
            vmem_limit_bytes=vmem_limit_bytes,
        ),
    )(v_emb, t_emb, wv, bv, wt, bt, wov, wot, bo)

    return out[:, :3]


def make_params(key, vdim, tdim, D):
    ks = jax.random.split(key, 8)
    # PyTorch Linear stores weight as [out, in]; we keep the transposed [in, out]
    # layout so the kernel computes x @ W directly.
    params = {
        "wv": jax.random.normal(ks[0], (vdim, D), jnp.float32) * 0.05,
        "bv": jax.random.normal(ks[1], (D,), jnp.float32) * 0.05,
        "wt": jax.random.normal(ks[2], (tdim, D), jnp.float32) * 0.05,
        "bt": jax.random.normal(ks[3], (D,), jnp.float32) * 0.05,
        "bn_gamma": jnp.ones((D,), jnp.float32) + 0.1 * jax.random.normal(ks[4], (D,), jnp.float32),
        "bn_beta": 0.1 * jax.random.normal(ks[5], (D,), jnp.float32),
        "bn_mean": 0.1 * jax.random.normal(ks[6], (D,), jnp.float32),
        "bn_var": jnp.abs(jax.random.normal(ks[7], (D,), jnp.float32)) + 0.5,
        "wo": jax.random.normal(jax.random.fold_in(key, 99), (2 * D, 3), jnp.float32) * 0.05,
        "bo": jax.random.normal(jax.random.fold_in(key, 100), (3,), jnp.float32) * 0.05,
    }
    return params


def reference(v_emb, t_emb, p):
    def bn_relu(x):
        inv = 1.0 / jnp.sqrt(p["bn_var"] + BN_EPS)
        y = (x - p["bn_mean"]) * inv * p["bn_gamma"] + p["bn_beta"]
        return jnp.maximum(y, 0.0)
    v = bn_relu(v_emb @ p["wv"] + p["bv"])
    t = bn_relu(t_emb @ p["wt"] + p["bt"])
    f = jnp.concatenate([v, t], axis=1)
    return f @ p["wo"] + p["bo"]


if __name__ == "__main__":
    # Small shapes consistent with the module head (real dims would be
    # vdim=2048 / tdim=768 / D=user-chosen).
    B, vdim, tdim, D = 32, 64, 48, 32
    key = jax.random.PRNGKey(0)
    k_v, k_t, k_p = jax.random.split(key, 3)

    # Synthetic backbone outputs (in place of resnet50 / roberta pooler outputs).
    v_emb = jax.random.normal(k_v, (B, vdim), jnp.float32)
    t_emb = jax.random.normal(k_t, (B, tdim), jnp.float32)
    params = make_params(k_p, vdim, tdim, D)

    ref = reference(v_emb, t_emb, params)

    # f32 compute path: exercises the BN fold / wo split / lane-padded output,
    # must match the unfused f32 reference tightly.
    out_f32 = jax.block_until_ready(
        fusion_head(v_emb, t_emb, params, compute_dtype=jnp.float32))
    assert out_f32.shape == (B, 3)
    assert jnp.allclose(out_f32, ref, atol=1e-4, rtol=1e-4), "f32 mismatch vs JAX reference"

    # Default bf16 compute path (f32 accumulation): looser tolerance.
    out_bf16 = jax.block_until_ready(fusion_head(v_emb, t_emb, params))
    assert out_bf16.shape == (B, 3)
    assert jnp.allclose(out_bf16, ref, atol=5e-2, rtol=5e-2), "bf16 mismatch vs JAX reference"

    # Ragged batch (B not a multiple of the tile) + multi-step grid: no host
    # padding, Pallas masks the writeback of the partial last block.
    B2 = 50
    v2 = jax.random.normal(jax.random.fold_in(key, 7), (B2, vdim), jnp.float32)
    t2 = jax.random.normal(jax.random.fold_in(key, 8), (B2, tdim), jnp.float32)
    ref2 = reference(v2, t2, params)
    out2 = jax.block_until_ready(
        fusion_head(v2, t2, params, compute_dtype=jnp.float32, batch_tile=32))
    assert out2.shape == (B2, 3)
    assert jnp.allclose(out2, ref2, atol=1e-4, rtol=1e-4), "ragged-batch mismatch vs JAX reference"

    print("KERNEL_OK")
</pallas_src>

<mosaic_0001>
module attributes {stable_mosaic.version = 11 : i64} {
  func.func @fusion_head_kernel(%arg0: i32, %arg1: memref<32x64xf32, #tpu.memory_space<vmem>>, %arg2: memref<32x48xf32, #tpu.memory_space<vmem>>, %arg3: memref<64x32xf32, #tpu.memory_space<vmem>>, %arg4: memref<1x32xf32, #tpu.memory_space<vmem>>, %arg5: memref<48x32xf32, #tpu.memory_space<vmem>>, %arg6: memref<1x32xf32, #tpu.memory_space<vmem>>, %arg7: memref<32x128xf32, #tpu.memory_space<vmem>>, %arg8: memref<32x128xf32, #tpu.memory_space<vmem>>, %arg9: memref<1x128xf32, #tpu.memory_space<vmem>>, %arg10: memref<32x128xf32, #tpu.memory_space<vmem>>) attributes {dimension_semantics = [#tpu.dimension_semantics<parallel>], iteration_bounds = array<i64: 1>, scalar_prefetch = 0 : i64, scratch_operands = 0 : i64, tpu.core_type = #tpu.core_type<tc>, window_params = [{transform_indices = @transform_0, window_bounds = array<i64: 32, 64>}, {transform_indices = @transform_1, window_bounds = array<i64: 32, 48>}, {pipeline_mode = #tpu.pipeline_mode<synchronous>, transform_indices = @transform_2, window_bounds = array<i64: 64, 32>}, {pipeline_mode = #tpu.pipeline_mode<synchronous>, transform_indices = @transform_3, window_bounds = array<i64: 1, 32>}, {pipeline_mode = #tpu.pipeline_mode<synchronous>, transform_indices = @transform_4, window_bounds = array<i64: 48, 32>}, {pipeline_mode = #tpu.pipeline_mode<synchronous>, transform_indices = @transform_5, window_bounds = array<i64: 1, 32>}, {pipeline_mode = #tpu.pipeline_mode<synchronous>, transform_indices = @transform_6, window_bounds = array<i64: 32, 128>}, {pipeline_mode = #tpu.pipeline_mode<synchronous>, transform_indices = @transform_7, window_bounds = array<i64: 32, 128>}, {pipeline_mode = #tpu.pipeline_mode<synchronous>, transform_indices = @transform_8, window_bounds = array<i64: 1, 128>}, {transform_indices = @transform_9, window_bounds = array<i64: 32, 128>}]} {
    %c0 = arith.constant 0 : index
    %c0_0 = arith.constant 0 : index
    %0 = vector.load %arg1[%c0, %c0_0] : memref<32x64xf32, #tpu.memory_space<vmem>>, vector<32x64xf32>
    %c0_1 = arith.constant 0 : index
    %c0_2 = arith.constant 0 : index
    %1 = vector.load %arg3[%c0_1, %c0_2] : memref<64x32xf32, #tpu.memory_space<vmem>>, vector<64x32xf32>
    %cst = arith.constant dense<0.000000e+00> : vector<32x32xf32>
    %2 = tpu.matmul %0, %1, %cst {dimension_numbers = #tpu.dot_dimension_numbers<[1], [0], [0], [1], [0, 0, 1, 1], [], []>} : vector<32x64xf32>, vector<64x32xf32>, vector<32x32xf32> -> vector<32x32xf32>
    %c0_3 = arith.constant 0 : index
    %c0_4 = arith.constant 0 : index
    %3 = vector.load %arg4[%c0_3, %c0_4] : memref<1x32xf32, #tpu.memory_space<vmem>>, vector<1x32xf32>
    %4 = vector.broadcast %3 : vector<1x32xf32> to vector<32x32xf32>
    %5 = arith.addf %2, %4 : vector<32x32xf32>
    %cst_5 = arith.constant 0.000000e+00 : f32
    %6 = vector.broadcast %cst_5 : f32 to vector<32x32xf32>
    %7 = arith.maximumf %5, %6 : vector<32x32xf32>
    %c0_6 = arith.constant 0 : index
    %c0_7 = arith.constant 0 : index
    %8 = vector.load %arg2[%c0_6, %c0_7] : memref<32x48xf32, #tpu.memory_space<vmem>>, vector<32x48xf32>
    %c0_8 = arith.constant 0 : index
    %c0_9 = arith.constant 0 : index
    %9 = vector.load %arg5[%c0_8, %c0_9] : memref<48x32xf32, #tpu.memory_space<vmem>>, vector<48x32xf32>
    %cst_10 = arith.constant dense<0.000000e+00> : vector<32x32xf32>
    %10 = tpu.matmul %8, %9, %cst_10 {dimension_numbers = #tpu.dot_dimension_numbers<[1], [0], [0], [1], [0, 0, 1, 1], [], []>} : vector<32x48xf32>, vector<48x32xf32>, vector<32x32xf32> -> vector<32x32xf32>
    %c0_11 = arith.constant 0 : index
    %c0_12 = arith.constant 0 : index
    %11 = vector.load %arg6[%c0_11, %c0_12] : memref<1x32xf32, #tpu.memory_space<vmem>>, vector<1x32xf32>
    %12 = vector.broadcast %11 : vector<1x32xf32> to vector<32x32xf32>
    %13 = arith.addf %10, %12 : vector<32x32xf32>
    %cst_13 = arith.constant 0.000000e+00 : f32
    %14 = vector.broadcast %cst_13 : f32 to vector<32x32xf32>
    %15 = arith.maximumf %13, %14 : vector<32x32xf32>
    %c0_14 = arith.constant 0 : index
    %c0_15 = arith.constant 0 : index
    %16 = vector.load %arg7[%c0_14, %c0_15] : memref<32x128xf32, #tpu.memory_space<vmem>>, vector<32x128xf32>
    %cst_16 = arith.constant dense<0.000000e+00> : vector<32x128xf32>
    %17 = tpu.matmul %7, %16, %cst_16 {dimension_numbers = #tpu.dot_dimension_numbers<[1], [0], [0], [1], [0, 0, 1, 1], [], []>} : vector<32x32xf32>, vector<32x128xf32>, vector<32x128xf32> -> vector<32x128xf32>
    %c0_17 = arith.constant 0 : index
    %c0_18 = arith.constant 0 : index
    %18 = vector.load %arg8[%c0_17, %c0_18] : memref<32x128xf32, #tpu.memory_space<vmem>>, vector<32x128xf32>
    %cst_19 = arith.constant dense<0.000000e+00> : vector<32x128xf32>
    %19 = tpu.matmul %15, %18, %cst_19 {dimension_numbers = #tpu.dot_dimension_numbers<[1], [0], [0], [1], [0, 0, 1, 1], [], []>} : vector<32x32xf32>, vector<32x128xf32>, vector<32x128xf32> -> vector<32x128xf32>
    %20 = arith.addf %17, %19 : vector<32x128xf32>
    %c0_20 = arith.constant 0 : index
    %c0_21 = arith.constant 0 : index
    %21 = vector.load %arg9[%c0_20, %c0_21] : memref<1x128xf32, #tpu.memory_space<vmem>>, vector<1x128xf32>
    %22 = vector.broadcast %21 : vector<1x128xf32> to vector<32x128xf32>
    %23 = arith.addf %20, %22 : vector<32x128xf32>
    %c0_22 = arith.constant 0 : index
    %c0_23 = arith.constant 0 : index
    %24 = vector.load %arg10[%c0_22, %c0_23] : memref<32x128xf32, #tpu.memory_space<vmem>>, vector<32x128xf32>
    tpu.vector_store %arg10[%c0_22, %c0_23], %23 {strides = array<i32>} : memref<32x128xf32, #tpu.memory_space<vmem>>, vector<32x128xf32>,
    return
  }
  func.func @transform_0(%arg0: i32) -> (i32, i32) {
    %c0_i32 = arith.constant 0 : i32
    %c0_i32_0 = arith.constant 0 : i32
    return %arg0, %c0_i32 : i32, i32
  }
  func.func @transform_1(%arg0: i32) -> (i32, i32) {
    %c0_i32 = arith.constant 0 : i32
    %c0_i32_0 = arith.constant 0 : i32
    return %arg0, %c0_i32 : i32, i32
  }
  func.func @transform_2(%arg0: i32) -> (i32, i32) {
    %c0_i32 = arith.constant 0 : i32
    %c0_i32_0 = arith.constant 0 : i32
    %c0_i32_1 = arith.constant 0 : i32
    return %c0_i32, %c0_i32_0 : i32, i32
  }
  func.func @transform_3(%arg0: i32) -> (i32, i32) {
    %c0_i32 = arith.constant 0 : i32
    %c0_i32_0 = arith.constant 0 : i32
    %c0_i32_1 = arith.constant 0 : i32
    return %c0_i32, %c0_i32_0 : i32, i32
  }
  func.func @transform_4(%arg0: i32) -> (i32, i32) {
    %c0_i32 = arith.constant 0 : i32
    %c0_i32_0 = arith.constant 0 : i32
    %c0_i32_1 = arith.constant 0 : i32
    return %c0_i32, %c0_i32_0 : i32, i32
  }
  func.func @transform_5(%arg0: i32) -> (i32, i32) {
    %c0_i32 = arith.constant 0 : i32
    %c0_i32_0 = arith.constant 0 : i32
    %c0_i32_1 = arith.constant 0 : i32
    return %c0_i32, %c0_i32_0 : i32, i32
  }
  func.func @transform_6(%arg0: i32) -> (i32, i32) {
    %c0_i32 = arith.constant 0 : i32
    %c0_i32_0 = arith.constant 0 : i32
    %c0_i32_1 = arith.constant 0 : i32
    return %c0_i32, %c0_i32_0 : i32, i32
  }
  func.func @transform_7(%arg0: i32) -> (i32, i32) {
    %c0_i32 = arith.constant 0 : i32
    %c0_i32_0 = arith.constant 0 : i32
    %c0_i32_1 = arith.constant 0 : i32
    return %c0_i32, %c0_i32_0 : i32, i32
  }
  func.func @transform_8(%arg0: i32) -> (i32, i32) {
    %c0_i32 = arith.constant 0 : i32
    %c0_i32_0 = arith.constant 0 : i32
    %c0_i32_1 = arith.constant 0 : i32
    return %c0_i32, %c0_i32_0 : i32, i32
  }
  func.func @transform_9(%arg0: i32) -> (i32, i32) {
    %c0_i32 = arith.constant 0 : i32
    %c0_i32_0 = arith.constant 0 : i32
    return %arg0, %c0_i32 : i32, i32
  }
}

</mosaic_0001>

<llo_original>
// kernel: tpu_custom_call.1
$region0: #{tpu_custom_call.1}
  #allocation0 [shape = 'u32[]', space=smem, size = 0x4, offset = 0x4, fixed_abs, tag = 'smem constant byte address 0x4 - core index']
  #allocation1 [shape = 'u32[144,128]{1,0:T(1,128)}', space=vmem, size = 0x12000, scoped, tag = 'internal scratch']
  %s0 = inlined_call_operand.vmem [shape: f32[32,64], index: 0, kind: input, shape index: {}]
  %s1 = inlined_call_operand.vmem [shape: f32[32,48], index: 1, kind: input, shape index: {}]
  %s2 = inlined_call_operand.vmem [shape: f32[64,32], index: 2, kind: input, shape index: {}]
  %s3 = inlined_call_operand.vmem [shape: f32[1,32], index: 3, kind: input, shape index: {}]
  %s4 = inlined_call_operand.vmem [shape: f32[48,32], index: 4, kind: input, shape index: {}]
  %s5 = inlined_call_operand.vmem [shape: f32[1,32], index: 5, kind: input, shape index: {}]
  %s6 = inlined_call_operand.vmem [shape: f32[32,128], index: 6, kind: input, shape index: {}]
  %s7 = inlined_call_operand.vmem [shape: f32[32,128], index: 7, kind: input, shape index: {}]
  %s8 = inlined_call_operand.vmem [shape: f32[1,128], index: 8, kind: input, shape index: {}]
  %s9 = inlined_call_operand.hbm [shape: f32[32,128], index: 9, kind: output, shape index: {}]
  %s10 = sld [smem:[#allocation0]]
  $region46: #{tpu_custom_call.1} parent=0
    _
  %s12 = ssub.s32 1, %s10
  %s13 = scalar_select 0, %s12, %s10
  $region1: #{tpu_custom_call.1} parent=0
    #allocation2 [shape = 'u8[16384]{0}', space=vmem, size = 0x4000, scoped, tag = 'output window, operand 0, single buffered']
    #allocation3 [shape = 's32[1]{0}', space=sflag, size = 0x4, scoped, tag = 'scoped memory for tpu_custom_call.1']
    %14 = vsyncpa [#allocation3], 0
    // Predicated region
    $region2: #{tpu_custom_call.1} parent=1 // pred_check
      _
    $region3: #{tpu_custom_call.1} parent=1 // pred_check_branch
      %16 = sbr.rel (0) target = $region5
    $region4: #{tpu_custom_call.1} parent=1 // pred_region
      _
    $region5: #{tpu_custom_call.1} parent=1 // pred_fallthru
      _
    // Predicated region
    $region6: #{tpu_custom_call.1} parent=1 // pred_check
      _
    $region7: #{tpu_custom_call.1} parent=1 // pred_check_branch
      %18 = sbr.rel (0) target = $region9
    $region8: #{tpu_custom_call.1} parent=1 // pred_region
      _
    $region9: #{tpu_custom_call.1} parent=1 // pred_fallthru
      _
    // Predicated region
    $region10: #{tpu_custom_call.1} parent=1 // pred_check
      _
    $region11: #{tpu_custom_call.1} parent=1 // pred_check_branch
      %20 = sbr.rel (0) target = $region13
    $region12: #{tpu_custom_call.1} parent=1 // pred_region
      _
    $region13: #{tpu_custom_call.1} parent=1 // pred_fallthru
      _
    // Predicated region
    $region14: #{tpu_custom_call.1} parent=1 // pred_check
      _
    $region15: #{tpu_custom_call.1} parent=1 // pred_check_branch
      %22 = sbr.rel (0) target = $region17
    $region16: #{tpu_custom_call.1} parent=1 // pred_region
      _
    $region17: #{tpu_custom_call.1} parent=1 // pred_fallthru
      _
    // Predicated region
    $region18: #{tpu_custom_call.1} parent=1 // pred_check
      _
    $region19: #{tpu_custom_call.1} parent=1 // pred_check_branch
      %24 = sbr.rel (0) target = $region21
    $region20: #{tpu_custom_call.1} parent=1 // pred_region
      _
    $region21: #{tpu_custom_call.1} parent=1 // pred_fallthru
      _
    // Predicated region
    $region22: #{tpu_custom_call.1} parent=1 // pred_check
      _
    $region23: #{tpu_custom_call.1} parent=1 // pred_check_branch
      %26 = sbr.rel (0) target = $region25
    $region24: #{tpu_custom_call.1} parent=1 // pred_region
      _
    $region25: #{tpu_custom_call.1} parent=1 // pred_fallthru
      _
    // Predicated region
    $region26: #{tpu_custom_call.1} parent=1 // pred_check
      _
    $region27: #{tpu_custom_call.1} parent=1 // pred_check_branch
      %28 = sbr.rel (0) target = $region29
    $region28: #{tpu_custom_call.1} parent=1 // pred_region
      _
    $region29: #{tpu_custom_call.1} parent=1 // pred_fallthru
      _
    // Predicated region
    $region30: #{tpu_custom_call.1} parent=1 // pred_check
      _
    $region31: #{tpu_custom_call.1} parent=1 // pred_check_branch
      %30 = sbr.rel (0) target = $region33
    $region32: #{tpu_custom_call.1} parent=1 // pred_region
      _
    $region33: #{tpu_custom_call.1} parent=1 // pred_fallthru
      _
    // Predicated region
    $region34: #{tpu_custom_call.1} parent=1 // pred_check
      _
    $region35: #{tpu_custom_call.1} parent=1 // pred_check_branch
      %32 = sbr.rel (0) target = $region37
    $region36: #{tpu_custom_call.1} parent=1 // pred_region
      _
    $region37: #{tpu_custom_call.1} parent=1 // pred_fallthru
      _
    %v33 = vld [vmem:[%s0] sm:$0xff]
    %v34 = vld [vmem:[%s0 + $0x8] sm:$0xff]
    %v35 = vld [vmem:[%s0 + $0x10] sm:$0xff]
    %v36 = vld [vmem:[%s0 + $0x18] sm:$0xff]
    %v37 = vld [vmem:[%s2] sm:$0xff]
    %v38 = vld [vmem:[%s2 + $0x8] sm:$0xff]
    %v39 = vld [vmem:[%s2 + $0x10] sm:$0xff]
    %v40 = vld [vmem:[%s2 + $0x18] sm:$0xff]
    %v41 = vld [vmem:[%s2 + $0x20] sm:$0xff]
    %v42 = vld [vmem:[%s2 + $0x28] sm:$0xff]
    %v43 = vld [vmem:[%s2 + $0x30] sm:$0xff]
    %v44 = vld [vmem:[%s2 + $0x38] sm:$0xff]
    %v45 = vld [vmem:[%s3] sm:$0x1]
    %v47 = vlaneseq
    %v48 = vshrl.u32 %v47, 7
    %v49 = vsub.s32 0, %v48
    %v50 = vrot.slane %v45, %v49
    %vm52 = vcmask 523264
    %v54 = vsel %vm52, %v33, 0
    %v57 = vsel %vm52, %v34, 0
    %v60 = vsel %vm52, %v35, 0
    %v63 = vsel %vm52, %v36, 0
    %65 = vmatprep.subr.mxu0 0.0
    %66 = vmatpush1.msra.mxu0 0.0
    %67 = vmatprep.subr.mxu0 0.0
    %68 = vmatpush1.msra.mxu0 0.0
    %69 = vmatprep.subr.mxu0 0.0
    %70 = vmatpush1.msra.mxu0 0.0
    %71 = vmatprep.subr.mxu0 0.0
    %72 = vmatpush1.msra.mxu0 0.0
    %73 = vmatprep.subr.mxu0 0.0
    %74 = vmatpush1.msra.mxu0 0.0
    %75 = vmatprep.subr.mxu0 0.0
    %76 = vmatpush1.msra.mxu0 0.0
    %77 = vmatprep.subr.mxu0 0.0
    %78 = vmatpush1.msra.mxu0 0.0
    %79 = vmatprep.subr.mxu0 0.0
    %80 = vmatpush1.msra.mxu0 0.0
    %81 = vmatprep.subr.mxu0 0.0
    %82 = vmatpush1.msra.mxu0 %v44
    %83 = vmatprep.subr.mxu0 0.0
    %84 = vmatpush1.msra.mxu0 %v43
    %85 = vmatprep.subr.mxu0 0.0
    %86 = vmatpush1.msra.mxu0 %v42
    %87 = vmatprep.subr.mxu0 0.0
    %88 = vmatpush1.msra.mxu0 %v41
    %89 = vmatprep.subr.mxu0 0.0
    %90 = vmatpush1.msra.mxu0 %v40
    %91 = vmatprep.subr.mxu0 0.0
    %92 = vmatpush1.msra.mxu0 %v39
    %93 = vmatprep.subr.mxu0 0.0
    %94 = vmatpush1.msra.mxu0 %v38
    %95 = vmatprep.subr.mxu0 0.0
    %96 = vmatpush1.msra.mxu0 %v37
    %97 = vmatprep.subr.mxu0 0.0
    %98 = vmatpush2.msra.mxu0 0.0
    %99 = vmatprep.subr.mxu0 0.0
    %100 = vmatpush2.msra.mxu0 0.0
    %101 = vmatprep.subr.mxu0 0.0
    %102 = vmatpush2.msra.mxu0 0.0
    %103 = vmatprep.subr.mxu0 0.0
    %104 = vmatpush2.msra.mxu0 0.0
    %105 = vmatprep.subr.mxu0 0.0
    %106 = vmatpush2.msra.mxu0 0.0
    %107 = vmatprep.subr.mxu0 0.0
    %108 = vmatpush2.msra.mxu0 0.0
    %109 = vmatprep.subr.mxu0 0.0
    %110 = vmatpush2.msra.mxu0 0.0
    %111 = vmatprep.subr.mxu0 0.0
    %112 = vmatpush2.msra.mxu0 0.0
    %113 = vmatprep.subr.mxu0 0.0
    %114 = vmatpush2.msra.mxu0 0.0
    %115 = vmatprep.subr.mxu0 0.0
    %116 = vmatpush2.msra.mxu0 0.0
    %117 = vmatprep.subr.mxu0 0.0
    %118 = vmatpush2.msra.mxu0 0.0
    %119 = vmatprep.subr.mxu0 0.0
    %120 = vmatpush2.msra.mxu0 0.0
    %121 = vmatprep.subr.mxu0 0.0
    %122 = vmatpush2.msra.mxu0 0.0
    %123 = vmatprep.subr.mxu0 0.0
    %124 = vmatpush2.msra.mxu0 0.0
    %125 = vmatprep.subr.mxu0 0.0
    %126 = vmatpush2.msra.mxu0 0.0
    %127 = vmatprep.subr.mxu0 0.0
    %128 = vmatpush2.msra.mxu0 0.0
    %129 = vmatprep.mubr.f32.mxu0 0.0
    %130 = vmatmul.mubr.f32.gmra.mxu0 %v54
    %v131 = vpop.f32.mrf.mxu0
    %v132 = vadd.f32 %v50, %v131
    %v133 = vpop.f32.mrf.mxu0
    %134 = vmatprep.mubr.f32.mxu0 0.0
    %135 = vmatmul.mubr.f32.gmra.mxu0 %v57
    %v136 = vpop.f32.mrf.mxu0
    %v137 = vadd.f32 %v50, %v136
    %v138 = vpop.f32.mrf.mxu0
    %139 = vmatprep.mubr.f32.mxu0 0.0
    %140 = vmatmul.mubr.f32.gmra.mxu0 %v60
    %v141 = vpop.f32.mrf.mxu0
    %v142 = vadd.f32 %v50, %v141
    %v143 = vpop.f32.mrf.mxu0
    %144 = vmatprep.mubr.f32.mxu0 0.0
    %145 = vmatmul.mubr.f32.gmra.mxu0 %v63
    %v146 = vpop.f32.mrf.mxu0
    %v147 = vadd.f32 %v50, %v146
    %v148 = vpop.f32.mrf.mxu0
    %149 = vdwg.mxu0
    %v150 = vmax.f32 %v132, 0.0
    %v151 = vmax.f32 %v137, 0.0
    %v152 = vmax.f32 %v142, 0.0
    %v153 = vmax.f32 %v147, 0.0
    %v154 = vld [vmem:[%s1] sm:$0xff]
    %v155 = vld [vmem:[%s1 + $0x8] sm:$0xff]
    %v156 = vld [vmem:[%s1 + $0x10] sm:$0xff]
    %v157 = vld [vmem:[%s1 + $0x18] sm:$0xff]
    %v158 = vld [vmem:[%s4] sm:$0xff]
    %v159 = vld [vmem:[%s4 + $0x8] sm:$0xff]
    %v160 = vld [vmem:[%s4 + $0x10] sm:$0xff]
    %v161 = vld [vmem:[%s4 + $0x18] sm:$0xff]
    %v162 = vld [vmem:[%s4 + $0x20] sm:$0xff]
    %v163 = vld [vmem:[%s4 + $0x28] sm:$0xff]
    %v164 = vld [vmem:[%s5] sm:$0x1]
    %v166 = vlaneseq
    %v167 = vshrl.u32 %v166, 7
    %v168 = vsub.s32 0, %v167
    %v169 = vrot.slane %v164, %v168
    %vm171 = vcmask 392192
    %v173 = vsel %vm171, %v154, 0
    %v176 = vsel %vm171, %v155, 0
    %v179 = vsel %vm171, %v156, 0
    %v182 = vsel %vm171, %v157, 0
    %184 = vmatprep.subr.mxu0 0.0
    %185 = vmatpush1.msra.mxu0 0.0
    %186 = vmatprep.subr.mxu0 0.0
    %187 = vmatpush1.msra.mxu0 0.0
    %188 = vmatprep.subr.mxu0 0.0
    %189 = vmatpush1.msra.mxu0 0.0
    %190 = vmatprep.subr.mxu0 0.0
    %191 = vmatpush1.msra.mxu0 0.0
    %192 = vmatprep.subr.mxu0 0.0
    %193 = vmatpush1.msra.mxu0 0.0
    %194 = vmatprep.subr.mxu0 0.0
    %195 = vmatpush1.msra.mxu0 0.0
    %196 = vmatprep.subr.mxu0 0.0
    %197 = vmatpush1.msra.mxu0 0.0
    %198 = vmatprep.subr.mxu0 0.0
    %199 = vmatpush1.msra.mxu0 0.0
    %200 = vmatprep.subr.mxu0 0.0
    %201 = vmatpush1.msra.mxu0 0.0
    %202 = vmatprep.subr.mxu0 0.0
    %203 = vmatpush1.msra.mxu0 0.0
    %204 = vmatprep.subr.mxu0 0.0
    %205 = vmatpush1.msra.mxu0 %v163
    %206 = vmatprep.subr.mxu0 0.0
    %207 = vmatpush1.msra.mxu0 %v162
    %208 = vmatprep.subr.mxu0 0.0
    %209 = vmatpush1.msra.mxu0 %v161
    %210 = vmatprep.subr.mxu0 0.0
    %211 = vmatpush1.msra.mxu0 %v160
    %212 = vmatprep.subr.mxu0 0.0
    %213 = vmatpush1.msra.mxu0 %v159
    %214 = vmatprep.subr.mxu0 0.0
    %215 = vmatpush1.msra.mxu0 %v158
    %216 = vmatprep.subr.mxu0 0.0
    %217 = vmatpush2.msra.mxu0 0.0
    %218 = vmatprep.subr.mxu0 0.0
    %219 = vmatpush2.msra.mxu0 0.0
    %220 = vmatprep.subr.mxu0 0.0
    %221 = vmatpush2.msra.mxu0 0.0
    %222 = vmatprep.subr.mxu0 0.0
    %223 = vmatpush2.msra.mxu0 0.0
    %224 = vmatprep.subr.mxu0 0.0
    %225 = vmatpush2.msra.mxu0 0.0
    %226 = vmatprep.subr.mxu0 0.0
    %227 = vmatpush2.msra.mxu0 0.0
    %228 = vmatprep.subr.mxu0 0.0
    %229 = vmatpush2.msra.mxu0 0.0
    %230 = vmatprep.subr.mxu0 0.0
    %231 = vmatpush2.msra.mxu0 0.0
    %232 = vmatprep.subr.mxu0 0.0
    %233 = vmatpush2.msra.mxu0 0.0
    %234 = vmatprep.subr.mxu0 0.0
    %235 = vmatpush2.msra.mxu0 0.0
    %236 = vmatprep.subr.mxu0 0.0
    %237 = vmatpush2.msra.mxu0 0.0
    %238 = vmatprep.subr.mxu0 0.0
    %239 = vmatpush2.msra.mxu0 0.0
    %240 = vmatprep.subr.mxu0 0.0
    %241 = vmatpush2.msra.mxu0 0.0
    %242 = vmatprep.subr.mxu0 0.0
    %243 = vmatpush2.msra.mxu0 0.0
    %244 = vmatprep.subr.mxu0 0.0
    %245 = vmatpush2.msra.mxu0 0.0
    %246 = vmatprep.subr.mxu0 0.0
    %247 = vmatpush2.msra.mxu0 0.0
    %248 = vmatprep.mubr.f32.mxu0 0.0
    %249 = vmatmul.mubr.f32.gmra.mxu0 %v173
    %v250 = vpop.f32.mrf.mxu0
    %v251 = vadd.f32 %v169, %v250
    %v252 = vpop.f32.mrf.mxu0
    %253 = vmatprep.mubr.f32.mxu0 0.0
    %254 = vmatmul.mubr.f32.gmra.mxu0 %v176
    %v255 = vpop.f32.mrf.mxu0
    %v256 = vadd.f32 %v169, %v255
    %v257 = vpop.f32.mrf.mxu0
    %258 = vmatprep.mubr.f32.mxu0 0.0
    %259 = vmatmul.mubr.f32.gmra.mxu0 %v179
    %v260 = vpop.f32.mrf.mxu0
    %v261 = vadd.f32 %v169, %v260
    %v262 = vpop.f32.mrf.mxu0
    %263 = vmatprep.mubr.f32.mxu0 0.0
    %264 = vmatmul.mubr.f32.gmra.mxu0 %v182
    %v265 = vpop.f32.mrf.mxu0
    %v266 = vadd.f32 %v169, %v265
    %v267 = vpop.f32.mrf.mxu0
    %268 = vdwg.mxu0
    %v269 = vmax.f32 %v251, 0.0
    %v270 = vmax.f32 %v256, 0.0
    %v271 = vmax.f32 %v261, 0.0
    %v272 = vmax.f32 %v266, 0.0
    %v273 = vld [vmem:[%s6] sm:$0xff]
    %v274 = vld [vmem:[%s6 + $0x8] sm:$0xff]
    %v275 = vld [vmem:[%s6 + $0x10] sm:$0xff]
    %v276 = vld [vmem:[%s6 + $0x18] sm:$0xff]
    %v277 = vld [vmem:[%s7] sm:$0xff]
    %v278 = vld [vmem:[%s7 + $0x8] sm:$0xff]
    %v279 = vld [vmem:[%s7 + $0x10] sm:$0xff]
    %v280 = vld [vmem:[%s7 + $0x18] sm:$0xff]
    %vm281 = vcmask 261120
    %v283 = vsel %vm281, %v269, 0
    %v286 = vsel %vm281, %v270, 0
    %v289 = vsel %vm281, %v271, 0
    %v292 = vsel %vm281, %v272, 0
    %294 = vmatprep.subr.mxu0 0.0
    %295 = vmatpush1.msra.mxu0 0.0
    %296 = vmatprep.subr.mxu0 0.0
    %297 = vmatpush1.msra.mxu0 0.0
    %298 = vmatprep.subr.mxu0 0.0
    %299 = vmatpush1.msra.mxu0 0.0
    %300 = vmatprep.subr.mxu0 0.0
    %301 = vmatpush1.msra.mxu0 0.0
    %302 = vmatprep.subr.mxu0 0.0
    %303 = vmatpush1.msra.mxu0 0.0
    %304 = vmatprep.subr.mxu0 0.0
    %305 = vmatpush1.msra.mxu0 0.0
    %306 = vmatprep.subr.mxu0 0.0
    %307 = vmatpush1.msra.mxu0 0.0
    %308 = vmatprep.subr.mxu0 0.0
    %309 = vmatpush1.msra.mxu0 0.0
    %310 = vmatprep.subr.mxu0 0.0
    %311 = vmatpush1.msra.mxu0 0.0
    %312 = vmatprep.subr.mxu0 0.0
    %313 = vmatpush1.msra.mxu0 0.0
    %314 = vmatprep.subr.mxu0 0.0
    %315 = vmatpush1.msra.mxu0 0.0
    %316 = vmatprep.subr.mxu0 0.0
    %317 = vmatpush1.msra.mxu0 0.0
    %318 = vmatprep.subr.mxu0 0.0
    %319 = vmatpush1.msra.mxu0 %v280
    %320 = vmatprep.subr.mxu0 0.0
    %321 = vmatpush1.msra.mxu0 %v279
    %322 = vmatprep.subr.mxu0 0.0
    %323 = vmatpush1.msra.mxu0 %v278
    %324 = vmatprep.subr.mxu0 0.0
    %325 = vmatpush1.msra.mxu0 %v277
    %326 = vmatprep.subr.mxu0 0.0
    %327 = vmatpush2.msra.mxu0 0.0
    %328 = vmatprep.subr.mxu0 0.0
    %329 = vmatpush2.msra.mxu0 0.0
    %330 = vmatprep.subr.mxu0 0.0
    %331 = vmatpush2.msra.mxu0 0.0
    %332 = vmatprep.subr.mxu0 0.0
    %333 = vmatpush2.msra.mxu0 0.0
    %334 = vmatprep.subr.mxu0 0.0
    %335 = vmatpush2.msra.mxu0 0.0
    %336 = vmatprep.subr.mxu0 0.0
    %337 = vmatpush2.msra.mxu0 0.0
    %338 = vmatprep.subr.mxu0 0.0
    %339 = vmatpush2.msra.mxu0 0.0
    %340 = vmatprep.subr.mxu0 0.0
    %341 = vmatpush2.msra.mxu0 0.0
    %342 = vmatprep.subr.mxu0 0.0
    %343 = vmatpush2.msra.mxu0 0.0
    %344 = vmatprep.subr.mxu0 0.0
    %345 = vmatpush2.msra.mxu0 0.0
    %346 = vmatprep.subr.mxu0 0.0
    %347 = vmatpush2.msra.mxu0 0.0
    %348 = vmatprep.subr.mxu0 0.0
    %349 = vmatpush2.msra.mxu0 0.0
    %350 = vmatprep.subr.mxu0 0.0
    %351 = vmatpush2.msra.mxu0 0.0
    %352 = vmatprep.subr.mxu0 0.0
    %353 = vmatpush2.msra.mxu0 0.0
    %354 = vmatprep.subr.mxu0 0.0
    %355 = vmatpush2.msra.mxu0 0.0
    %356 = vmatprep.subr.mxu0 0.0
    %357 = vmatpush2.msra.mxu0 0.0
    %358 = vmatprep.mubr.f32.mxu0 0.0
    %359 = vmatmul.mubr.f32.gmra.mxu0 %v283
    %v360 = vpop.f32.mrf.mxu0
    %v361 = vadd.f32 0.0, %v360
    %v362 = vpop.f32.mrf.mxu0
    %363 = vmatprep.mubr.f32.mxu0 0.0
    %364 = vmatmul.mubr.f32.gmra.mxu0 %v286
    %v365 = vpop.f32.mrf.mxu0
    %v366 = vadd.f32 0.0, %v365
    %v367 = vpop.f32.mrf.mxu0
    %368 = vmatprep.mubr.f32.mxu0 0.0
    %369 = vmatmul.mubr.f32.gmra.mxu0 %v289
    %v370 = vpop.f32.mrf.mxu0
    %v371 = vadd.f32 0.0, %v370
    %v372 = vpop.f32.mrf.mxu0
    %373 = vmatprep.mubr.f32.mxu0 0.0
    %374 = vmatmul.mubr.f32.gmra.mxu0 %v292
    %v375 = vpop.f32.mrf.mxu0
    %v376 = vadd.f32 0.0, %v375
    %v377 = vpop.f32.mrf.mxu0
    %378 = vdwg.mxu0
    %v380 = vsel %vm281, %v150, 0
    %v383 = vsel %vm281, %v151, 0
    %v386 = vsel %vm281, %v152, 0
    %v389 = vsel %vm281, %v153, 0
    %391 = vmatprep.subr.mxu0 0.0
    %392 = vmatpush1.msra.mxu0 0.0
    %393 = vmatprep.subr.mxu0 0.0
    %394 = vmatpush1.msra.mxu0 0.0
    %395 = vmatprep.subr.mxu0 0.0
    %396 = vmatpush1.msra.mxu0 0.0
    %397 = vmatprep.subr.mxu0 0.0
    %398 = vmatpush1.msra.mxu0 0.0
    %399 = vmatprep.subr.mxu0 0.0
    %400 = vmatpush1.msra.mxu0 0.0
    %401 = vmatprep.subr.mxu0 0.0
    %402 = vmatpush1.msra.mxu0 0.0
    %403 = vmatprep.subr.mxu0 0.0
    %404 = vmatpush1.msra.mxu0 0.0
    %405 = vmatprep.subr.mxu0 0.0
    %406 = vmatpush1.msra.mxu0 0.0
    %407 = vmatprep.subr.mxu0 0.0
    %408 = vmatpush1.msra.mxu0 0.0
    %409 = vmatprep.subr.mxu0 0.0
    %410 = vmatpush1.msra.mxu0 0.0
    %411 = vmatprep.subr.mxu0 0.0
    %412 = vmatpush1.msra.mxu0 0.0
    %413 = vmatprep.subr.mxu0 0.0
    %414 = vmatpush1.msra.mxu0 0.0
    %415 = vmatprep.subr.mxu0 0.0
    %416 = vmatpush1.msra.mxu0 %v276
    %417 = vmatprep.subr.mxu0 0.0
    %418 = vmatpush1.msra.mxu0 %v275
    %419 = vmatprep.subr.mxu0 0.0
    %420 = vmatpush1.msra.mxu0 %v274
    %421 = vmatprep.subr.mxu0 0.0
    %422 = vmatpush1.msra.mxu0 %v273
    %423 = vmatprep.subr.mxu0 0.0
    %424 = vmatpush2.msra.mxu0 0.0
    %425 = vmatprep.subr.mxu0 0.0
    %426 = vmatpush2.msra.mxu0 0.0
    %427 = vmatprep.subr.mxu0 0.0
    %428 = vmatpush2.msra.mxu0 0.0
    %429 = vmatprep.subr.mxu0 0.0
    %430 = vmatpush2.msra.mxu0 0.0
    %431 = vmatprep.subr.mxu0 0.0
    %432 = vmatpush2.msra.mxu0 0.0
    %433 = vmatprep.subr.mxu0 0.0
    %434 = vmatpush2.msra.mxu0 0.0
    %435 = vmatprep.subr.mxu0 0.0
    %436 = vmatpush2.msra.mxu0 0.0
    %437 = vmatprep.subr.mxu0 0.0
    %438 = vmatpush2.msra.mxu0 0.0
    %439 = vmatprep.subr.mxu0 0.0
    %440 = vmatpush2.msra.mxu0 0.0
    %441 = vmatprep.subr.mxu0 0.0
    %442 = vmatpush2.msra.mxu0 0.0
    %443 = vmatprep.subr.mxu0 0.0
    %444 = vmatpush2.msra.mxu0 0.0
    %445 = vmatprep.subr.mxu0 0.0
    %446 = vmatpush2.msra.mxu0 0.0
    %447 = vmatprep.subr.mxu0 0.0
    %448 = vmatpush2.msra.mxu0 0.0
    %449 = vmatprep.subr.mxu0 0.0
    %450 = vmatpush2.msra.mxu0 0.0
    %451 = vmatprep.subr.mxu0 0.0
    %452 = vmatpush2.msra.mxu0 0.0
    %453 = vmatprep.subr.mxu0 0.0
    %454 = vmatpush2.msra.mxu0 0.0
    %455 = vmatprep.mubr.f32.mxu0 0.0
    %456 = vmatmul.mubr.f32.gmra.mxu0 %v380
    %v457 = vpop.f32.mrf.mxu0
    %v458 = vadd.f32 %v361, %v457
    %v459 = vpop.f32.mrf.mxu0
    %460 = vmatprep.mubr.f32.mxu0 0.0
    %461 = vmatmul.mubr.f32.gmra.mxu0 %v383
    %v462 = vpop.f32.mrf.mxu0
    %v463 = vadd.f32 %v366, %v462
    %v464 = vpop.f32.mrf.mxu0
    %465 = vmatprep.mubr.f32.mxu0 0.0
    %466 = vmatmul.mubr.f32.gmra.mxu0 %v386
    %v467 = vpop.f32.mrf.mxu0
    %v468 = vadd.f32 %v371, %v467
    %v469 = vpop.f32.mrf.mxu0
    %470 = vmatprep.mubr.f32.mxu0 0.0
    %471 = vmatmul.mubr.f32.gmra.mxu0 %v389
    %v472 = vpop.f32.mrf.mxu0
    %v473 = vadd.f32 %v376, %v472
    %v474 = vpop.f32.mrf.mxu0
    %475 = vdwg.mxu0
    %v476 = vld [vmem:[%s8] sm:$0x1]
    %v478 = vlaneseq
    %v479 = vshrl.u32 %v478, 7
    %v480 = vsub.s32 0, %v479
    %v481 = vrot.slane %v476, %v480
    %v483 = vadd.f32 %v458, %v481
    %v484 = vadd.f32 %v463, %v481
    %v485 = vadd.f32 %v468, %v481
    %v486 = vadd.f32 %v473, %v481
    %487 = vst [vmem:[#allocation2] sm:$0xff] %v483
    %488 = vst [vmem:[#allocation2 + $0x8] sm:$0xff] %v484
    %489 = vst [vmem:[#allocation2 + $0x10] sm:$0xff] %v485
    %490 = vst [vmem:[#allocation2 + $0x18] sm:$0xff] %v486
    // Predicated region
    $region38: #{tpu_custom_call.1} parent=1 // pred_check
      _
    $region39: #{tpu_custom_call.1} parent=1 // pred_check_branch
      %492 = sbr.rel (0) target = $region41
    $region40: #{tpu_custom_call.1} parent=1 // pred_region
      %s494 = ssub.s32 512, 512
      %495 = vsyncadd [#allocation3], %s494
      %s496 = sshll.u32 [#allocation2], 4
      %s497 = int_to_ptr.vmem [resolvable:$true] %s496
      %502 = dma.vmem_to_hbm [thread:$0]  %s497, 512, %s9, [#allocation3], 128, 128, 8
    $region41: #{tpu_custom_call.1} parent=1 // pred_fallthru
      _
    // Predicated region
    $region42: #{tpu_custom_call.1} parent=1 // pred_check
      _
    $region43: #{tpu_custom_call.1} parent=1 // pred_check_branch
      %504 = sbr.rel (0) target = $region45
    $region44: #{tpu_custom_call.1} parent=1 // pred_region
      %505 = dma.done [#allocation3], 512
    $region45: #{tpu_custom_call.1} parent=1 // pred_fallthru
      _
    %506 = vsyncpa [#allocation3], 1

</llo_original>
